<compile_context>
chip_gen: v5e
topology: v5e:2x2
jax: 0.10.0
libtpu: 0.0.40
codegen_flags: <defaults>
</compile_context>

<pallas_src>
import functools

import jax
import jax.numpy as jnp
from jax.experimental import pallas as pl
from jax.experimental.pallas import tpu as pltpu

LANE = 128


def _round_up(n, m):
    return ((n + m - 1) // m) * m


def _uniform31(seed_u32, tag, shape):
    """Stateless counter-based RNG: one non-negative 31-bit uniform int per element.

    Pure jnp integer ops (iota / xor / shift / mul) so it lowers both on real TPU
    (Mosaic) and on the CPU interpret fallback, unlike pltpu.prng_*.
    """
    rows = jax.lax.broadcasted_iota(jnp.int32, shape, 0).astype(jnp.uint32)
    cols = jax.lax.broadcasted_iota(jnp.int32, shape, 1).astype(jnp.uint32)
    x = rows * jnp.uint32(shape[1]) + cols
    x = x + seed_u32 * jnp.uint32(0x9E3779B9) + jnp.uint32(tag + 1) * jnp.uint32(0x85EBCA6B)
    # murmur3 fmix32-style avalanche
    x = x ^ (x >> jnp.uint32(16))
    x = x * jnp.uint32(0x7FEB352D)
    x = x ^ (x >> jnp.uint32(15))
    x = x * jnp.uint32(0x846CA68B)
    x = x ^ (x >> jnp.uint32(16))
    return (x >> jnp.uint32(1)).astype(jnp.int32)  # uniform in [0, 2^31)


# ------------------------------- fused kernel --------------------------------

def _fused_mlp_kernel(seed_ref, x_ref, *refs, rate, training):
    """refs = (w0, b0, w1, b1, ..., o_ref).  Entire MLP in one kernel:
    activations stay on-chip between layers (no HBM round trips)."""
    o_ref = refs[-1]
    n_layers = (len(refs) - 1) // 2

    h = x_ref[...].astype(jnp.float32)

    apply_dropout = training and rate > 0.0
    if apply_dropout:
        seed_u32 = seed_ref[0].astype(jnp.uint32)
        # drop iff u31 < rate * 2^31  (integer threshold compare, no float RNG math)
        threshold = jnp.int32(min(int(round(rate * (1 << 31))), (1 << 31) - 1))
        scale = jnp.float32(1.0 / (1.0 - rate))

    for li in range(n_layers):
        w = refs[2 * li][...]        # (pin, pout) bf16, zero padded
        b = refs[2 * li + 1][...]    # (1, pout)  f32, zero padded
        # bf16 MXU operands, f32 accumulation; epilogue in f32.
        y = jnp.dot(h.astype(jnp.bfloat16), w, preferred_element_type=jnp.float32)
        y = jnp.tanh(y + b)
        if apply_dropout:
            u = _uniform31(seed_u32, li, y.shape)
            keep = u >= threshold
            y = jnp.where(keep, y * scale, jnp.float32(0.0))
        h = y

    o_ref[...] = h.astype(o_ref.dtype)


# --------------------------------- wrapper ------------------------------------

def mlp_forward(x, params, dropout_rate, training, seed=0):
    """Matches MLPWithDefaultLayer.forward: x -> [Linear -> Tanh -> Dropout?] * L,
    executed as a single fused pallas_call."""
    B, din0 = x.shape
    dout_last = params[-1][0].shape[1]

    # Lane-dense padding: every feature dim rounded up to a multiple of 128.
    pin0 = _round_up(din0, LANE)
    xp = jnp.pad(x.astype(jnp.float32), ((0, 0), (0, pin0 - din0)))

    inputs = [jnp.asarray([seed], dtype=jnp.int32), xp]
    in_specs = [
        pl.BlockSpec(memory_space=pltpu.MemorySpace.SMEM),   # seed scalar
        pl.BlockSpec((B, pin0), lambda i: (0, 0)),
    ]
    for (w, b) in params:
        din, dout = w.shape
        pin, pout = _round_up(din, LANE), _round_up(dout, LANE)
        wp = jnp.pad(w, ((0, pin - din), (0, pout - dout))).astype(jnp.bfloat16)
        bp = jnp.pad(b.astype(jnp.float32), ((0, 0), (0, pout - dout)))
        inputs += [wp, bp]
        in_specs += [
            pl.BlockSpec((pin, pout), lambda i: (0, 0)),
            pl.BlockSpec((1, pout), lambda i: (0, 0)),
        ]
    pout_last = _round_up(dout_last, LANE)

    kernel = functools.partial(
        _fused_mlp_kernel, rate=float(dropout_rate), training=bool(training)
    )
    out = pl.pallas_call(
        kernel,
        out_shape=jax.ShapeDtypeStruct((B, pout_last), jnp.float32),
        grid=(1,),
        in_specs=in_specs,
        out_specs=pl.BlockSpec((B, pout_last), lambda i: (0, 0)),
    )(*inputs)
    return out[:, :dout_last]


# --------------------------- params & pure-JAX reference -----------------------

def init_mlp_params(key, size):
    """Per-layer (W, b) with W non-negative ('NonNegLinear'), W stored (Din, Dout)."""
    params = []
    in_features = size[0]
    for i in range(1, len(size)):
        out_features = size[i]
        key, wkey = jax.random.split(key)
        w = jnp.abs(
            jax.random.normal(wkey, (in_features, out_features), dtype=jnp.float32)
        ) / jnp.sqrt(jnp.float32(in_features))
        b = jnp.zeros((1, out_features), dtype=jnp.float32)
        params.append((w, b))
        in_features = out_features
    return params


def mlp_reference_eval(x, params):
    """Eval-mode reference using the same bf16-operand / f32-accumulate math."""
    h = x.astype(jnp.float32)
    for (w, b) in params:
        y = jnp.dot(
            h.astype(jnp.bfloat16),
            w.astype(jnp.bfloat16),
            preferred_element_type=jnp.float32,
        )
        h = jnp.tanh(y + b)
    return h


# ----------------------------------- demo --------------------------------------

if __name__ == "__main__":
    key = jax.random.PRNGKey(0)
    key, xkey, pkey = jax.random.split(key, 3)

    size = (32, 64, 32, 16)   # [in_features, hidden..., out]
    batch = 8
    dropout_rate = 0.2

    x = jax.random.normal(xkey, (batch, size[0]), dtype=jnp.float32)
    params = init_mlp_params(pkey, size)

    # eval-mode forward (F.dropout(training=False) is identity)
    y_eval = mlp_forward(x, params, dropout_rate, training=False)
    jax.block_until_ready(y_eval)
    assert y_eval.shape == (batch, size[-1])
    assert bool(jnp.all(jnp.isfinite(y_eval)))
    assert bool(jnp.max(jnp.abs(y_eval)) <= 1.0 + 1e-5)   # tanh output range

    y_ref = mlp_reference_eval(x, params)
    assert bool(jnp.max(jnp.abs(y_eval - y_ref)) < 2e-2)

    # training-mode forward (inverted dropout fused into the kernel, deterministic seed)
    y_train = mlp_forward(x, params, dropout_rate, training=True, seed=1234)
    jax.block_until_ready(y_train)
    assert y_train.shape == (batch, size[-1])
    assert bool(jnp.all(jnp.isfinite(y_train)))
    zero_frac = float(jnp.mean((y_train == 0.0).astype(jnp.float32)))
    assert 0.01 < zero_frac < 0.75, zero_frac   # roughly `dropout_rate` of entries dropped

    print("KERNEL_OK")
</pallas_src>

<mosaic_0001>
module attributes {stable_mosaic.version = 11 : i64} {
  func.func @_fused_mlp_kernel(%arg0: i32, %arg1: memref<1xi32, #tpu.memory_space<smem>>, %arg2: memref<8x128xf32, #tpu.memory_space<vmem>>, %arg3: memref<128x128xbf16, #tpu.memory_space<vmem>>, %arg4: memref<1x128xf32, #tpu.memory_space<vmem>>, %arg5: memref<128x128xbf16, #tpu.memory_space<vmem>>, %arg6: memref<1x128xf32, #tpu.memory_space<vmem>>, %arg7: memref<128x128xbf16, #tpu.memory_space<vmem>>, %arg8: memref<1x128xf32, #tpu.memory_space<vmem>>, %arg9: memref<8x128xf32, #tpu.memory_space<vmem>>) attributes {dimension_semantics = [#tpu.dimension_semantics<arbitrary>], iteration_bounds = array<i64: 1>, scalar_prefetch = 0 : i64, scratch_operands = 0 : i64, tpu.core_type = #tpu.core_type<tc>, window_params = [{transform_indices = @transform_0, window_bounds = array<i64: 1>}, {pipeline_mode = #tpu.pipeline_mode<synchronous>, transform_indices = @transform_1, window_bounds = array<i64: 8, 128>}, {pipeline_mode = #tpu.pipeline_mode<synchronous>, transform_indices = @transform_2, window_bounds = array<i64: 128, 128>}, {pipeline_mode = #tpu.pipeline_mode<synchronous>, transform_indices = @transform_3, window_bounds = array<i64: 1, 128>}, {pipeline_mode = #tpu.pipeline_mode<synchronous>, transform_indices = @transform_4, window_bounds = array<i64: 128, 128>}, {pipeline_mode = #tpu.pipeline_mode<synchronous>, transform_indices = @transform_5, window_bounds = array<i64: 1, 128>}, {pipeline_mode = #tpu.pipeline_mode<synchronous>, transform_indices = @transform_6, window_bounds = array<i64: 128, 128>}, {pipeline_mode = #tpu.pipeline_mode<synchronous>, transform_indices = @transform_7, window_bounds = array<i64: 1, 128>}, {pipeline_mode = #tpu.pipeline_mode<synchronous>, transform_indices = @transform_8, window_bounds = array<i64: 8, 128>}]} {
    %c0 = arith.constant 0 : index
    %c0_0 = arith.constant 0 : index
    %0 = vector.load %arg2[%c0, %c0_0] : memref<8x128xf32, #tpu.memory_space<vmem>>, vector<8x128xf32>
    %c0_1 = arith.constant 0 : index
    %c0_2 = arith.constant 0 : index
    %1 = vector.load %arg3[%c0_1, %c0_2] : memref<128x128xbf16, #tpu.memory_space<vmem>>, vector<128x128xbf16>
    %c0_3 = arith.constant 0 : index
    %c0_4 = arith.constant 0 : index
    %2 = vector.load %arg4[%c0_3, %c0_4] : memref<1x128xf32, #tpu.memory_space<vmem>>, vector<1x128xf32>
    %3 = arith.truncf %0 : vector<8x128xf32> to vector<8x128xbf16>
    %cst = arith.constant dense<0.000000e+00> : vector<8x128xf32>
    %4 = tpu.matmul %3, %1, %cst {dimension_numbers = #tpu.dot_dimension_numbers<[1], [0], [0], [1], [0, 0, 1, 1], [], []>} : vector<8x128xbf16>, vector<128x128xbf16>, vector<8x128xf32> -> vector<8x128xf32>
    %5 = vector.broadcast %2 : vector<1x128xf32> to vector<8x128xf32>
    %6 = arith.addf %4, %5 : vector<8x128xf32>
    %7 = math.tanh %6 : vector<8x128xf32>
    %c0_5 = arith.constant 0 : index
    %c0_6 = arith.constant 0 : index
    %8 = vector.load %arg5[%c0_5, %c0_6] : memref<128x128xbf16, #tpu.memory_space<vmem>>, vector<128x128xbf16>
    %c0_7 = arith.constant 0 : index
    %c0_8 = arith.constant 0 : index
    %9 = vector.load %arg6[%c0_7, %c0_8] : memref<1x128xf32, #tpu.memory_space<vmem>>, vector<1x128xf32>
    %10 = arith.truncf %7 : vector<8x128xf32> to vector<8x128xbf16>
    %cst_9 = arith.constant dense<0.000000e+00> : vector<8x128xf32>
    %11 = tpu.matmul %10, %8, %cst_9 {dimension_numbers = #tpu.dot_dimension_numbers<[1], [0], [0], [1], [0, 0, 1, 1], [], []>} : vector<8x128xbf16>, vector<128x128xbf16>, vector<8x128xf32> -> vector<8x128xf32>
    %12 = vector.broadcast %9 : vector<1x128xf32> to vector<8x128xf32>
    %13 = arith.addf %11, %12 : vector<8x128xf32>
    %14 = math.tanh %13 : vector<8x128xf32>
    %c0_10 = arith.constant 0 : index
    %c0_11 = arith.constant 0 : index
    %15 = vector.load %arg7[%c0_10, %c0_11] : memref<128x128xbf16, #tpu.memory_space<vmem>>, vector<128x128xbf16>
    %c0_12 = arith.constant 0 : index
    %c0_13 = arith.constant 0 : index
    %16 = vector.load %arg8[%c0_12, %c0_13] : memref<1x128xf32, #tpu.memory_space<vmem>>, vector<1x128xf32>
    %17 = arith.truncf %14 : vector<8x128xf32> to vector<8x128xbf16>
    %cst_14 = arith.constant dense<0.000000e+00> : vector<8x128xf32>
    %18 = tpu.matmul %17, %15, %cst_14 {dimension_numbers = #tpu.dot_dimension_numbers<[1], [0], [0], [1], [0, 0, 1, 1], [], []>} : vector<8x128xbf16>, vector<128x128xbf16>, vector<8x128xf32> -> vector<8x128xf32>
    %19 = vector.broadcast %16 : vector<1x128xf32> to vector<8x128xf32>
    %20 = arith.addf %18, %19 : vector<8x128xf32>
    %21 = math.tanh %20 : vector<8x128xf32>
    %c0_15 = arith.constant 0 : index
    %c0_16 = arith.constant 0 : index
    %22 = vector.load %arg9[%c0_15, %c0_16] : memref<8x128xf32, #tpu.memory_space<vmem>>, vector<8x128xf32>
    tpu.vector_store %arg9[%c0_15, %c0_16], %21 {strides = array<i32>} : memref<8x128xf32, #tpu.memory_space<vmem>>, vector<8x128xf32>,
    return
  }
  func.func @transform_0(%arg0: i32) -> i32 {
    %c0_i32 = arith.constant 0 : i32
    %c0_i32_0 = arith.constant 0 : i32
    return %c0_i32 : i32
  }
  func.func @transform_1(%arg0: i32) -> (i32, i32) {
    %c0_i32 = arith.constant 0 : i32
    %c0_i32_0 = arith.constant 0 : i32
    %c0_i32_1 = arith.constant 0 : i32
    return %c0_i32, %c0_i32_0 : i32, i32
  }
  func.func @transform_2(%arg0: i32) -> (i32, i32) {
    %c0_i32 = arith.constant 0 : i32
    %c0_i32_0 = arith.constant 0 : i32
    %c0_i32_1 = arith.constant 0 : i32
    return %c0_i32, %c0_i32_0 : i32, i32
  }
  func.func @transform_3(%arg0: i32) -> (i32, i32) {
    %c0_i32 = arith.constant 0 : i32
    %c0_i32_0 = arith.constant 0 : i32
    %c0_i32_1 = arith.constant 0 : i32
    return %c0_i32, %c0_i32_0 : i32, i32
  }
  func.func @transform_4(%arg0: i32) -> (i32, i32) {
    %c0_i32 = arith.constant 0 : i32
    %c0_i32_0 = arith.constant 0 : i32
    %c0_i32_1 = arith.constant 0 : i32
    return %c0_i32, %c0_i32_0 : i32, i32
  }
  func.func @transform_5(%arg0: i32) -> (i32, i32) {
    %c0_i32 = arith.constant 0 : i32
    %c0_i32_0 = arith.constant 0 : i32
    %c0_i32_1 = arith.constant 0 : i32
    return %c0_i32, %c0_i32_0 : i32, i32
  }
  func.func @transform_6(%arg0: i32) -> (i32, i32) {
    %c0_i32 = arith.constant 0 : i32
    %c0_i32_0 = arith.constant 0 : i32
    %c0_i32_1 = arith.constant 0 : i32
    return %c0_i32, %c0_i32_0 : i32, i32
  }
  func.func @transform_7(%arg0: i32) -> (i32, i32) {
    %c0_i32 = arith.constant 0 : i32
    %c0_i32_0 = arith.constant 0 : i32
    %c0_i32_1 = arith.constant 0 : i32
    return %c0_i32, %c0_i32_0 : i32, i32
  }
  func.func @transform_8(%arg0: i32) -> (i32, i32) {
    %c0_i32 = arith.constant 0 : i32
    %c0_i32_0 = arith.constant 0 : i32
    %c0_i32_1 = arith.constant 0 : i32
    return %c0_i32, %c0_i32_0 : i32, i32
  }
}

</mosaic_0001>

<llo_original>
// kernel: tpu_custom_call.1
$region0: #{tpu_custom_call.1}
  #allocation0 [shape = 'u32[]', space=smem, size = 0x4, offset = 0x4, fixed_abs, tag = 'smem constant byte address 0x4 - core index']
  #allocation1 [shape = 'u32[72,128]{1,0:T(1,128)}', space=vmem, size = 0x9000, scoped, tag = 'internal scratch']
  #allocation2 [shape = 's32[1]{0:T(128)S(6)}', space=smem, size = 0x200, scoped, tag = 'scoped memory for tpu_custom_call.1']
  %s0 = inlined_call_operand.<no memory space> [shape: s32[1], index: 0, kind: input, shape index: {}]
  %s1 = inlined_call_operand.hbm [shape: f32[8,128], index: 1, kind: input, shape index: {}]
  %s2 = inlined_call_operand.hbm [shape: bf16[128,128], index: 2, kind: input, shape index: {}]
  %s3 = inlined_call_operand.vmem [shape: f32[1,128], index: 3, kind: input, shape index: {}]
  %s4 = inlined_call_operand.hbm [shape: bf16[128,128], index: 4, kind: input, shape index: {}]
  %s5 = inlined_call_operand.vmem [shape: f32[1,128], index: 5, kind: input, shape index: {}]
  %s6 = inlined_call_operand.hbm [shape: bf16[128,128], index: 6, kind: input, shape index: {}]
  %s7 = inlined_call_operand.vmem [shape: f32[1,128], index: 7, kind: input, shape index: {}]
  %s8 = inlined_call_operand.hbm [shape: f32[8,128], index: 8, kind: output, shape index: {}]
  %s9 = sld [smem:[#allocation0]]
  $region58: #{tpu_custom_call.1} parent=0
    _
  %s11 = ssub.s32 1, %s9
  %s12 = scalar_select 0, %s11, %s9
  %13 = sst [smem:[#allocation2]] %s0
  $region1: #{tpu_custom_call.1} parent=0
    #allocation3 [shape = 'u8[4096]{0}', space=vmem, size = 0x1000, scoped, tag = 'input window, operand 1, single buffered']
    #allocation4 [shape = 's32[1]{0}', space=sflag, size = 0x4, scoped, tag = 'scoped memory for tpu_custom_call.1']
    #allocation5 [shape = 's32[1]{0}', space=sflag, size = 0x4, scoped, tag = 'scoped memory for tpu_custom_call.1']
    #allocation6 [shape = 'u8[32768]{0}', space=vmem, size = 0x8000, scoped, tag = 'input window, operand 2, single buffered']
    #allocation7 [shape = 's32[1]{0}', space=sflag, size = 0x4, scoped, tag = 'scoped memory for tpu_custom_call.1']
    #allocation8 [shape = 'u8[32768]{0}', space=vmem, size = 0x8000, scoped, tag = 'input window, operand 4, single buffered']
    #allocation9 [shape = 'u8[32768]{0}', space=vmem, size = 0x8000, scoped, tag = 'input window, operand 6, single buffered']
    #allocation10 [shape = 's32[1]{0}', space=sflag, size = 0x4, scoped, tag = 'scoped memory for tpu_custom_call.1']
    #allocation11 [shape = 'u8[4096]{0}', space=vmem, size = 0x1000, scoped, tag = 'output window, operand 0, single buffered']
    %14 = vsyncpa [#allocation4], 0
    %15 = vsyncpa [#allocation7], 0
    %16 = vsyncpa [#allocation10], 0
    %17 = vsyncpa [#allocation5], 0
    // Predicated region
    $region2: #{tpu_custom_call.1} parent=1 // pred_check
      _
    $region3: #{tpu_custom_call.1} parent=1 // pred_check_branch
      %19 = sbr.rel (0) target = $region5
    $region4: #{tpu_custom_call.1} parent=1 // pred_region
      _
    $region5: #{tpu_custom_call.1} parent=1 // pred_fallthru
      _
    // Predicated region
    $region6: #{tpu_custom_call.1} parent=1 // pred_check
      _
    $region7: #{tpu_custom_call.1} parent=1 // pred_check_branch
      %21 = sbr.rel (0) target = $region9
    $region8: #{tpu_custom_call.1} parent=1 // pred_region
      %23 = vsyncadd [#allocation4], 0
      %s25 = sshll.u32 %s1, 4
      %s26 = int_to_ptr.hbm [resolvable:$true] %s25
      %s27 = sshll.u32 [#allocation3], 4
      %s28 = int_to_ptr.vmem [resolvable:$true] %s27
      %30 = dma.hbm_to_vmem [thread:$0]  %s26, 128, %s28, [#allocation4]
    $region9: #{tpu_custom_call.1} parent=1 // pred_fallthru
      _
    // Predicated region
    $region10: #{tpu_custom_call.1} parent=1 // pred_check
      _
    $region11: #{tpu_custom_call.1} parent=1 // pred_check_branch
      %32 = sbr.rel (0) target = $region13
    $region12: #{tpu_custom_call.1} parent=1 // pred_region
      %34 = vsyncadd [#allocation7], 0
      %s35 = sshll.u32 %s2, 4
      %s36 = int_to_ptr.hbm [resolvable:$true] %s35
      %s37 = sshll.u32 [#allocation6], 4
      %s38 = int_to_ptr.vmem [resolvable:$true] %s37
      %43 = dma.hbm_to_vmem [thread:$0]  %s36, 1024, %s38, [#allocation7], 64, 64, 4
    $region13: #{tpu_custom_call.1} parent=1 // pred_fallthru
      _
    // Predicated region
    $region14: #{tpu_custom_call.1} parent=1 // pred_check
      _
    $region15: #{tpu_custom_call.1} parent=1 // pred_check_branch
      %45 = sbr.rel (0) target = $region17
    $region16: #{tpu_custom_call.1} parent=1 // pred_region
      _
    $region17: #{tpu_custom_call.1} parent=1 // pred_fallthru
      _
    // Predicated region
    $region18: #{tpu_custom_call.1} parent=1 // pred_check
      _
    $region19: #{tpu_custom_call.1} parent=1 // pred_check_branch
      %47 = sbr.rel (0) target = $region21
    $region20: #{tpu_custom_call.1} parent=1 // pred_region
      %49 = vsyncadd [#allocation7], 0
      %s50 = sshll.u32 %s4, 4
      %s51 = int_to_ptr.hbm [resolvable:$true] %s50
      %s52 = sshll.u32 [#allocation8], 4
      %s53 = int_to_ptr.vmem [resolvable:$true] %s52
      %58 = dma.hbm_to_vmem [thread:$0]  %s51, 1024, %s53, [#allocation7], 64, 64, 4
    $region21: #{tpu_custom_call.1} parent=1 // pred_fallthru
      _
    // Predicated region
    $region22: #{tpu_custom_call.1} parent=1 // pred_check
      _
    $region23: #{tpu_custom_call.1} parent=1 // pred_check_branch
      %60 = sbr.rel (0) target = $region25
    $region24: #{tpu_custom_call.1} parent=1 // pred_region
      _
    $region25: #{tpu_custom_call.1} parent=1 // pred_fallthru
      _
    // Predicated region
    $region26: #{tpu_custom_call.1} parent=1 // pred_check
      _
    $region27: #{tpu_custom_call.1} parent=1 // pred_check_branch
      %62 = sbr.rel (0) target = $region29
    $region28: #{tpu_custom_call.1} parent=1 // pred_region
      %64 = vsyncadd [#allocation10], 0
      %s65 = sshll.u32 %s6, 4
      %s66 = int_to_ptr.hbm [resolvable:$true] %s65
      %s67 = sshll.u32 [#allocation9], 4
      %s68 = int_to_ptr.vmem [resolvable:$true] %s67
      %73 = dma.hbm_to_vmem [thread:$0]  %s66, 1024, %s68, [#allocation10], 64, 64, 4
    $region29: #{tpu_custom_call.1} parent=1 // pred_fallthru
      _
    // Predicated region
    $region30: #{tpu_custom_call.1} parent=1 // pred_check
      _
    $region31: #{tpu_custom_call.1} parent=1 // pred_check_branch
      %75 = sbr.rel (0) target = $region33
    $region32: #{tpu_custom_call.1} parent=1 // pred_region
      _
    $region33: #{tpu_custom_call.1} parent=1 // pred_fallthru
      _
    // Predicated region
    $region34: #{tpu_custom_call.1} parent=1 // pred_check
      _
    $region35: #{tpu_custom_call.1} parent=1 // pred_check_branch
      %77 = sbr.rel (0) target = $region37
    $region36: #{tpu_custom_call.1} parent=1 // pred_region
      %79 = dma.done [#allocation4], 128
    $region37: #{tpu_custom_call.1} parent=1 // pred_fallthru
      _
    // Predicated region
    $region38: #{tpu_custom_call.1} parent=1 // pred_check
      _
    $region39: #{tpu_custom_call.1} parent=1 // pred_check_branch
      %81 = sbr.rel (0) target = $region41
    $region40: #{tpu_custom_call.1} parent=1 // pred_region
      %83 = dma.done [#allocation7], 1024
    $region41: #{tpu_custom_call.1} parent=1 // pred_fallthru
      _
    // Predicated region
    $region42: #{tpu_custom_call.1} parent=1 // pred_check
      _
    $region43: #{tpu_custom_call.1} parent=1 // pred_check_branch
      %85 = sbr.rel (0) target = $region45
    $region44: #{tpu_custom_call.1} parent=1 // pred_region
      %87 = dma.done [#allocation7], 1024
    $region45: #{tpu_custom_call.1} parent=1 // pred_fallthru
      _
    // Predicated region
    $region46: #{tpu_custom_call.1} parent=1 // pred_check
      _
    $region47: #{tpu_custom_call.1} parent=1 // pred_check_branch
      %89 = sbr.rel (0) target = $region49
    $region48: #{tpu_custom_call.1} parent=1 // pred_region
      %91 = dma.done [#allocation10], 1024
    $region49: #{tpu_custom_call.1} parent=1 // pred_fallthru
      _
    %v92 = vld [vmem:[#allocation3] sm:$0xff]
    %v93 = vld [vmem:[#allocation6] sm:$0xf]
    %v94 = vld [vmem:[#allocation6 + $0x4] sm:$0xf]
    %v95 = vld [vmem:[#allocation6 + $0x8] sm:$0xf]
    %v96 = vld [vmem:[#allocation6 + $0xc] sm:$0xf]
    %v97 = vld [vmem:[#allocation6 + $0x10] sm:$0xf]
    %v98 = vld [vmem:[#allocation6 + $0x14] sm:$0xf]
    %v99 = vld [vmem:[#allocation6 + $0x18] sm:$0xf]
    %v100 = vld [vmem:[#allocation6 + $0x1c] sm:$0xf]
    %v101 = vld [vmem:[#allocation6 + $0x20] sm:$0xf]
    %v102 = vld [vmem:[#allocation6 + $0x24] sm:$0xf]
    %v103 = vld [vmem:[#allocation6 + $0x28] sm:$0xf]
    %v104 = vld [vmem:[#allocation6 + $0x2c] sm:$0xf]
    %v105 = vld [vmem:[#allocation6 + $0x30] sm:$0xf]
    %v106 = vld [vmem:[#allocation6 + $0x34] sm:$0xf]
    %v107 = vld [vmem:[#allocation6 + $0x38] sm:$0xf]
    %v108 = vld [vmem:[#allocation6 + $0x3c] sm:$0xf]
    %v109 = vld [vmem:[%s3] sm:$0x1]
    %v110 = vpack.c.bf16 %v92, %v92
    %v112 = vperm.slane %v109, 0
    %v130 = vunpack.c.l.b16 %v93
    %v131 = vunpack.c.l.b16 %v94
    %v132 = vunpack.c.l.b16 %v95
    %v133 = vunpack.c.l.b16 %v96
    %v134 = vunpack.c.l.b16 %v97
    %v135 = vunpack.c.l.b16 %v98
    %v136 = vunpack.c.l.b16 %v99
    %v137 = vunpack.c.l.b16 %v100
    %v138 = vunpack.c.l.b16 %v101
    %v139 = vunpack.c.l.b16 %v102
    %v140 = vunpack.c.l.b16 %v103
    %v141 = vunpack.c.l.b16 %v104
    %v142 = vunpack.c.l.b16 %v105
    %v143 = vunpack.c.l.b16 %v106
    %v144 = vunpack.c.l.b16 %v107
    %v145 = vunpack.c.l.b16 %v108
    %v146 = vpack.c.b16 %v131, %v130
    %v147 = vpack.c.b16 %v133, %v132
    %v148 = vpack.c.b16 %v135, %v134
    %v149 = vpack.c.b16 %v137, %v136
    %v150 = vpack.c.b16 %v139, %v138
    %v151 = vpack.c.b16 %v141, %v140
    %v152 = vpack.c.b16 %v143, %v142
    %v153 = vpack.c.b16 %v145, %v144
    %162 = vmatpush.bf16.msra.mxu0 %v153
    %163 = vmatpush.bf16.msra.mxu0 %v152
    %164 = vmatpush.bf16.msra.mxu0 %v151
    %165 = vmatpush.bf16.msra.mxu0 %v150
    %166 = vmatpush.bf16.msra.mxu0 %v149
    %167 = vmatpush.bf16.msra.mxu0 %v148
    %168 = vmatpush.bf16.msra.mxu0 %v147
    %169 = vmatpush.bf16.msra.mxu0 %v146
    %170 = vmatmul.bf16.gmra.mxu0 %v110
    %v171 = vpop.f32.mrf.mxu0
    %v172 = vadd.f32 %v112, %v171
    %v173 = vpop.f32.mrf.mxu0
    %174 = vdwg.mxu0
    %v175 = vtanh.pop %v172
    %v176 = vld [vmem:[#allocation8] sm:$0xf]
    %v177 = vld [vmem:[#allocation8 + $0x4] sm:$0xf]
    %v178 = vld [vmem:[#allocation8 + $0x8] sm:$0xf]
    %v179 = vld [vmem:[#allocation8 + $0xc] sm:$0xf]
    %v180 = vld [vmem:[#allocation8 + $0x10] sm:$0xf]
    %v181 = vld [vmem:[#allocation8 + $0x14] sm:$0xf]
    %v182 = vld [vmem:[#allocation8 + $0x18] sm:$0xf]
    %v183 = vld [vmem:[#allocation8 + $0x1c] sm:$0xf]
    %v184 = vld [vmem:[#allocation8 + $0x20] sm:$0xf]
    %v185 = vld [vmem:[#allocation8 + $0x24] sm:$0xf]
    %v186 = vld [vmem:[#allocation8 + $0x28] sm:$0xf]
    %v187 = vld [vmem:[#allocation8 + $0x2c] sm:$0xf]
    %v188 = vld [vmem:[#allocation8 + $0x30] sm:$0xf]
    %v189 = vld [vmem:[#allocation8 + $0x34] sm:$0xf]
    %v190 = vld [vmem:[#allocation8 + $0x38] sm:$0xf]
    %v191 = vld [vmem:[#allocation8 + $0x3c] sm:$0xf]
    %v192 = vld [vmem:[%s5] sm:$0x1]
    %v193 = vpack.c.bf16 %v175, %v175
    %v195 = vperm.slane %v192, 0
    %v213 = vunpack.c.l.b16 %v176
    %v214 = vunpack.c.l.b16 %v177
    %v215 = vunpack.c.l.b16 %v178
    %v216 = vunpack.c.l.b16 %v179
    %v217 = vunpack.c.l.b16 %v180
    %v218 = vunpack.c.l.b16 %v181
    %v219 = vunpack.c.l.b16 %v182
    %v220 = vunpack.c.l.b16 %v183
    %v221 = vunpack.c.l.b16 %v184
    %v222 = vunpack.c.l.b16 %v185
    %v223 = vunpack.c.l.b16 %v186
    %v224 = vunpack.c.l.b16 %v187
    %v225 = vunpack.c.l.b16 %v188
    %v226 = vunpack.c.l.b16 %v189
    %v227 = vunpack.c.l.b16 %v190
    %v228 = vunpack.c.l.b16 %v191
    %v229 = vpack.c.b16 %v214, %v213
    %v230 = vpack.c.b16 %v216, %v215
    %v231 = vpack.c.b16 %v218, %v217
    %v232 = vpack.c.b16 %v220, %v219
    %v233 = vpack.c.b16 %v222, %v221
    %v234 = vpack.c.b16 %v224, %v223
    %v235 = vpack.c.b16 %v226, %v225
    %v236 = vpack.c.b16 %v228, %v227
    %245 = vmatpush.bf16.msra.mxu0 %v236
    %246 = vmatpush.bf16.msra.mxu0 %v235
    %247 = vmatpush.bf16.msra.mxu0 %v234
    %248 = vmatpush.bf16.msra.mxu0 %v233
    %249 = vmatpush.bf16.msra.mxu0 %v232
    %250 = vmatpush.bf16.msra.mxu0 %v231
    %251 = vmatpush.bf16.msra.mxu0 %v230
    %252 = vmatpush.bf16.msra.mxu0 %v229
    %253 = vmatmul.bf16.gmra.mxu0 %v193
    %v254 = vpop.f32.mrf.mxu0
    %v255 = vadd.f32 %v195, %v254
    %v256 = vpop.f32.mrf.mxu0
    %257 = vdwg.mxu0
    %v258 = vtanh.pop %v255
    %v259 = vld [vmem:[#allocation9] sm:$0xf]
    %v260 = vld [vmem:[#allocation9 + $0x4] sm:$0xf]
    %v261 = vld [vmem:[#allocation9 + $0x8] sm:$0xf]
    %v262 = vld [vmem:[#allocation9 + $0xc] sm:$0xf]
    %v263 = vld [vmem:[#allocation9 + $0x10] sm:$0xf]
    %v264 = vld [vmem:[#allocation9 + $0x14] sm:$0xf]
    %v265 = vld [vmem:[#allocation9 + $0x18] sm:$0xf]
    %v266 = vld [vmem:[#allocation9 + $0x1c] sm:$0xf]
    %v267 = vld [vmem:[#allocation9 + $0x20] sm:$0xf]
    %v268 = vld [vmem:[#allocation9 + $0x24] sm:$0xf]
    %v269 = vld [vmem:[#allocation9 + $0x28] sm:$0xf]
    %v270 = vld [vmem:[#allocation9 + $0x2c] sm:$0xf]
    %v271 = vld [vmem:[#allocation9 + $0x30] sm:$0xf]
    %v272 = vld [vmem:[#allocation9 + $0x34] sm:$0xf]
    %v273 = vld [vmem:[#allocation9 + $0x38] sm:$0xf]
    %v274 = vld [vmem:[#allocation9 + $0x3c] sm:$0xf]
    %v275 = vld [vmem:[%s7] sm:$0x1]
    %v276 = vpack.c.bf16 %v258, %v258
    %v278 = vperm.slane %v275, 0
    %v296 = vunpack.c.l.b16 %v259
    %v297 = vunpack.c.l.b16 %v260
    %v298 = vunpack.c.l.b16 %v261
    %v299 = vunpack.c.l.b16 %v262
    %v300 = vunpack.c.l.b16 %v263
    %v301 = vunpack.c.l.b16 %v264
    %v302 = vunpack.c.l.b16 %v265
    %v303 = vunpack.c.l.b16 %v266
    %v304 = vunpack.c.l.b16 %v267
    %v305 = vunpack.c.l.b16 %v268
    %v306 = vunpack.c.l.b16 %v269
    %v307 = vunpack.c.l.b16 %v270
    %v308 = vunpack.c.l.b16 %v271
    %v309 = vunpack.c.l.b16 %v272
    %v310 = vunpack.c.l.b16 %v273
    %v311 = vunpack.c.l.b16 %v274
    %v312 = vpack.c.b16 %v297, %v296
    %v313 = vpack.c.b16 %v299, %v298
    %v314 = vpack.c.b16 %v301, %v300
    %v315 = vpack.c.b16 %v303, %v302
    %v316 = vpack.c.b16 %v305, %v304
    %v317 = vpack.c.b16 %v307, %v306
    %v318 = vpack.c.b16 %v309, %v308
    %v319 = vpack.c.b16 %v311, %v310
    %328 = vmatpush.bf16.msra.mxu0 %v319
    %329 = vmatpush.bf16.msra.mxu0 %v318
    %330 = vmatpush.bf16.msra.mxu0 %v317
    %331 = vmatpush.bf16.msra.mxu0 %v316
    %332 = vmatpush.bf16.msra.mxu0 %v315
    %333 = vmatpush.bf16.msra.mxu0 %v314
    %334 = vmatpush.bf16.msra.mxu0 %v313
    %335 = vmatpush.bf16.msra.mxu0 %v312
    %336 = vmatmul.bf16.gmra.mxu0 %v276
    %v337 = vpop.f32.mrf.mxu0
    %v338 = vadd.f32 %v278, %v337
    %v339 = vpop.f32.mrf.mxu0
    %340 = vdwg.mxu0
    %v341 = vtanh.pop %v338
    %342 = vst [vmem:[#allocation11] sm:$0xff] %v341
    // Predicated region
    $region50: #{tpu_custom_call.1} parent=1 // pred_check
      _
    $region51: #{tpu_custom_call.1} parent=1 // pred_check_branch
      %344 = sbr.rel (0) target = $region53
    $region52: #{tpu_custom_call.1} parent=1 // pred_region
      %346 = vsyncadd [#allocation5], 0
      %s348 = sshll.u32 [#allocation11], 4
      %s349 = int_to_ptr.vmem [resolvable:$true] %s348
      %s350 = sshll.u32 %s8, 4
      %s351 = int_to_ptr.hbm [resolvable:$true] %s350
      %353 = dma.vmem_to_hbm [thread:$0]  %s349, 128, %s351, [#allocation5]
    $region53: #{tpu_custom_call.1} parent=1 // pred_fallthru
      _
    // Predicated region
    $region54: #{tpu_custom_call.1} parent=1 // pred_check
      _
    $region55: #{tpu_custom_call.1} parent=1 // pred_check_branch
      %355 = sbr.rel (0) target = $region57
    $region56: #{tpu_custom_call.1} parent=1 // pred_region
      %357 = dma.done [#allocation5], 128
    $region57: #{tpu_custom_call.1} parent=1 // pred_fallthru
      _
    %358 = vsyncpa [#allocation4], 1
    %359 = vsyncpa [#allocation7], 1
    %360 = vsyncpa [#allocation10], 1
    %361 = vsyncpa [#allocation5], 1

</llo_original>
